<compile_context>
chip_gen: v6e
topology: v6e:2x2x1
jax: 0.10.0
libtpu: 0.0.40
codegen_flags: <defaults>
</compile_context>

<pallas_src>
import jax
import jax.numpy as jnp
from jax.experimental import pallas as pl
from jax.experimental.pallas import tpu as pltpu

LANE = 128   # lane width  (last dim)
SUB = 8      # sublane width (second-to-last dim)


def _round_up(x, m):
    return (x + m - 1) // m * m


def _cdiv(a, b):
    return (a + b - 1) // b


def _lrelu(x, slope=0.1):
    return jnp.where(x > 0, x, slope * x)


# ---------------------------------------------------------------------------
# Kernel: whole 4-layer MLP on one batch tile; weights resident in VMEM.
# ---------------------------------------------------------------------------
def semantic_decoder_kernel(z_ref,
                            w0_ref, b0_ref,
                            w1_ref, b1_ref,
                            w2_ref, b2_ref,
                            w3_ref, b3_ref,
                            o_ref):
    # Activations kept f32 through bias-add + LeakyReLU (safe on v5e's VPU);
    # cast to bf16 only at each MXU input.  Accumulation is f32.
    x = z_ref[...]

    # fc0 + LeakyReLU(0.1)
    x = _lrelu(jnp.dot(x.astype(jnp.bfloat16), w0_ref[...],
                       preferred_element_type=jnp.float32) + b0_ref[...])
    # fc1 + LeakyReLU(0.1)
    x = _lrelu(jnp.dot(x.astype(jnp.bfloat16), w1_ref[...],
                       preferred_element_type=jnp.float32) + b1_ref[...])
    # fc2 + LeakyReLU(0.1)
    x = _lrelu(jnp.dot(x.astype(jnp.bfloat16), w2_ref[...],
                       preferred_element_type=jnp.float32) + b2_ref[...])
    # fc3 (no activation)
    x = jnp.dot(x.astype(jnp.bfloat16), w3_ref[...],
                preferred_element_type=jnp.float32) + b3_ref[...]

    o_ref[...] = x.astype(o_ref.dtype)


# ---------------------------------------------------------------------------
# Host-side helpers
# ---------------------------------------------------------------------------
def init_params(key, latent_size, semantic_dim):
    """Mirror weights_init: Linear weights ~ N(0, 0.02), biases = 0.
    Weights stored [in, out] (transposed relative to PyTorch)."""
    dims = [
        (latent_size, latent_size * 2),          # fc0
        (latent_size * 2, semantic_dim // 2),    # fc1
        (semantic_dim // 2, semantic_dim),       # fc2
        (semantic_dim, semantic_dim),            # fc3
    ]
    params = {}
    keys = jax.random.split(key, len(dims))
    for i, ((d_in, d_out), k) in enumerate(zip(dims, keys)):
        params[f"w{i}"] = 0.02 * jax.random.normal(k, (d_in, d_out), jnp.float32)
        params[f"b{i}"] = jnp.zeros((1, d_out), jnp.float32)
    return params


def pad_params(params, weight_dtype=jnp.bfloat16):
    """Zero-pad every layer's output dim (and the input dim of layers 1..3)
    up to a multiple of 128.  Layer 0's input dim is left UNPADDED so z can be
    passed without a host-side lane pad (Mosaic pads the K dim internally).
    Weights stored in `weight_dtype` (bf16 = MXU-native); biases stay f32.
    Done once on the host; padding is mathematically exact (see header)."""
    padded = {}
    for i in range(4):
        w = params[f"w{i}"]
        b = params[f"b{i}"]
        din, dout = w.shape
        dpi = din if i == 0 else _round_up(din, LANE)
        dpo = _round_up(dout, LANE)
        padded[f"w{i}"] = (jnp.zeros((dpi, dpo), weight_dtype)
                           .at[:din, :dout].set(w.astype(weight_dtype)))
        padded[f"b{i}"] = (jnp.zeros((1, dpo), jnp.float32)
                           .at[:, :dout].set(b.astype(jnp.float32)))
    return padded


def _choose_batch_tiling(B, block_batch):
    """Pick (tile_rows, padded_batch, n_grid_steps).
    - batch overshoot is at most one sublane's worth (no wasted big tiles)
    - >=2 grid steps whenever B allows it, so v7x's second TensorCore works."""
    bp_sub = _round_up(B, SUB)
    n = _cdiv(bp_sub, block_batch)
    if n == 1 and bp_sub >= 2 * SUB:
        n = 2
    tm = _round_up(_cdiv(bp_sub, n), SUB)
    bp = n * tm
    return tm, bp, n


def semantic_decoder(z, padded_params, out_dim, *, block_batch=1024):
    """z: [B, latent_size] f32 (unpadded features).
    padded_params: output of pad_params (bf16 weights, f32 biases).
    Returns [B, out_dim] f32."""
    B, d_in = z.shape
    assert padded_params["w0"].shape[0] == d_in, "w0 in-dim must match z"
    d_out_p = padded_params["w3"].shape[1]

    tm, bp, n_steps = _choose_batch_tiling(B, block_batch)

    # Batch-pad only (no lane pad); padded rows are sliced away at the end.
    zp = z if bp == B else jnp.zeros((bp, d_in), z.dtype).at[:B].set(z)

    weight_args = tuple(padded_params[k] for k in
                        ("w0", "b0", "w1", "b1", "w2", "b2", "w3", "b3"))

    # Weights/biases: full-array blocks, constant index_map -> VMEM-resident;
    # single-buffered since the block never changes (halves their footprint).
    weight_specs = [
        pl.BlockSpec(p.shape, lambda i: (0, 0), pipeline_mode=pl.Buffered(1))
        for p in weight_args
    ]

    # VMEM budget (planned against v7x's 64 MiB): resident weights/biases (1x),
    # double-buffered z/out tiles, f32 activation temporaries + headroom.
    weight_bytes = sum(int(p.size) * p.dtype.itemsize for p in weight_args)
    io_bytes = 2 * (tm * d_in * 4) + 2 * (tm * d_out_p * 4)
    act_bytes = 6 * tm * max(int(p.shape[1]) for p in weight_args[::2]) * 4
    vmem_limit = int(min(max(weight_bytes + io_bytes + act_bytes + (8 << 20),
                             16 << 20), 64 << 20))

    # Advisory cost estimate (4 matmuls, bf16 weights, f32 activations).
    flops = 2 * bp * sum(int(padded_params[f"w{i}"].shape[0]) *
                         int(padded_params[f"w{i}"].shape[1]) for i in range(4))
    bytes_accessed = int(zp.size * zp.dtype.itemsize + weight_bytes
                         + bp * d_out_p * 4)

    out_padded = pl.pallas_call(
        semantic_decoder_kernel,
        out_shape=jax.ShapeDtypeStruct((bp, d_out_p), jnp.float32),
        grid=(n_steps,),
        in_specs=[pl.BlockSpec((tm, d_in), lambda i: (i, 0))] + weight_specs,
        out_specs=pl.BlockSpec((tm, d_out_p), lambda i: (i, 0)),
        compiler_params=pltpu.CompilerParams(
            dimension_semantics=("parallel",),
            vmem_limit_bytes=vmem_limit),
        cost_estimate=pl.CostEstimate(flops=flops, transcendentals=0,
                                      bytes_accessed=bytes_accessed),
    )(zp, *weight_args)

    # Slice away batch + lane padding (drop this if downstream can consume
    # the lane-padded slab directly).
    return out_padded[:B, :out_dim]


def semantic_decoder_ref(z, params):
    """Pure-JAX f32 reference (unpadded) for correctness checking."""
    x = _lrelu(z @ params["w0"] + params["b0"])
    x = _lrelu(x @ params["w1"] + params["b1"])
    x = _lrelu(x @ params["w2"] + params["b2"])
    x = x @ params["w3"] + params["b3"]
    return x


# ---------------------------------------------------------------------------
if __name__ == "__main__":
    # Small, forward-consistent shapes: latent_size=32, semantic_dim=64, batch=8.
    latent_size = 32
    semantic_dim = 64
    batch = 8

    key = jax.random.PRNGKey(0)
    k_z, k_p = jax.random.split(key)

    z = jax.random.normal(k_z, (batch, latent_size), jnp.float32)
    params = init_params(k_p, latent_size, semantic_dim)

    # Pad once on the host: bf16 weights (MXU-native), f32 biases.
    padded = pad_params(params, weight_dtype=jnp.bfloat16)

    out = jax.block_until_ready(semantic_decoder(z, padded, semantic_dim))
    ref = semantic_decoder_ref(z, params)

    assert out.shape == (batch, semantic_dim)
    # bf16 MXU operands -> looser tolerance than pure-f32.
    assert jnp.allclose(out, ref, atol=5e-3, rtol=5e-2), \
        float(jnp.max(jnp.abs(out - ref)))

    print("KERNEL_OK")
</pallas_src>

<mosaic_0001>
module attributes {stable_mosaic.version = 11 : i64} {
  func.func @semantic_decoder_kernel(%arg0: i32, %arg1: memref<8x32xf32, #tpu.memory_space<vmem>>, %arg2: memref<32x128xbf16, #tpu.memory_space<vmem>>, %arg3: memref<1x128xf32, #tpu.memory_space<vmem>>, %arg4: memref<128x128xbf16, #tpu.memory_space<vmem>>, %arg5: memref<1x128xf32, #tpu.memory_space<vmem>>, %arg6: memref<128x128xbf16, #tpu.memory_space<vmem>>, %arg7: memref<1x128xf32, #tpu.memory_space<vmem>>, %arg8: memref<128x128xbf16, #tpu.memory_space<vmem>>, %arg9: memref<1x128xf32, #tpu.memory_space<vmem>>, %arg10: memref<8x128xf32, #tpu.memory_space<vmem>>) attributes {dimension_semantics = [#tpu.dimension_semantics<parallel>], iteration_bounds = array<i64: 1>, scalar_prefetch = 0 : i64, scratch_operands = 0 : i64, tpu.core_type = #tpu.core_type<tc>, window_params = [{transform_indices = @transform_0, window_bounds = array<i64: 8, 32>}, {pipeline_mode = #tpu.pipeline_mode<synchronous>, transform_indices = @transform_1, window_bounds = array<i64: 32, 128>}, {pipeline_mode = #tpu.pipeline_mode<synchronous>, transform_indices = @transform_2, window_bounds = array<i64: 1, 128>}, {pipeline_mode = #tpu.pipeline_mode<synchronous>, transform_indices = @transform_3, window_bounds = array<i64: 128, 128>}, {pipeline_mode = #tpu.pipeline_mode<synchronous>, transform_indices = @transform_4, window_bounds = array<i64: 1, 128>}, {pipeline_mode = #tpu.pipeline_mode<synchronous>, transform_indices = @transform_5, window_bounds = array<i64: 128, 128>}, {pipeline_mode = #tpu.pipeline_mode<synchronous>, transform_indices = @transform_6, window_bounds = array<i64: 1, 128>}, {pipeline_mode = #tpu.pipeline_mode<synchronous>, transform_indices = @transform_7, window_bounds = array<i64: 128, 128>}, {pipeline_mode = #tpu.pipeline_mode<synchronous>, transform_indices = @transform_8, window_bounds = array<i64: 1, 128>}, {transform_indices = @transform_9, window_bounds = array<i64: 8, 128>}]} {
    %c0 = arith.constant 0 : index
    %c0_0 = arith.constant 0 : index
    %0 = vector.load %arg1[%c0, %c0_0] : memref<8x32xf32, #tpu.memory_space<vmem>>, vector<8x32xf32>
    %1 = arith.truncf %0 : vector<8x32xf32> to vector<8x32xbf16>
    %c0_1 = arith.constant 0 : index
    %c0_2 = arith.constant 0 : index
    %2 = vector.load %arg2[%c0_1, %c0_2] : memref<32x128xbf16, #tpu.memory_space<vmem>>, vector<32x128xbf16>
    %cst = arith.constant dense<0.000000e+00> : vector<8x128xf32>
    %3 = tpu.matmul %1, %2, %cst {dimension_numbers = #tpu.dot_dimension_numbers<[1], [0], [0], [1], [0, 0, 1, 1], [], []>} : vector<8x32xbf16>, vector<32x128xbf16>, vector<8x128xf32> -> vector<8x128xf32>
    %c0_3 = arith.constant 0 : index
    %c0_4 = arith.constant 0 : index
    %4 = vector.load %arg3[%c0_3, %c0_4] : memref<1x128xf32, #tpu.memory_space<vmem>>, vector<1x128xf32>
    %5 = vector.broadcast %4 : vector<1x128xf32> to vector<8x128xf32>
    %6 = arith.addf %3, %5 : vector<8x128xf32>
    %cst_5 = arith.constant 0.000000e+00 : f32
    %7 = vector.broadcast %cst_5 : f32 to vector<8x128xf32>
    %8 = arith.cmpf ogt, %6, %7 : vector<8x128xf32>
    %cst_6 = arith.constant 1.000000e-01 : f32
    %9 = vector.broadcast %cst_6 : f32 to vector<8x128xf32>
    %10 = arith.mulf %9, %6 : vector<8x128xf32>
    %11 = arith.select %8, %6, %10 : vector<8x128xi1>, vector<8x128xf32>
    %12 = arith.truncf %11 : vector<8x128xf32> to vector<8x128xbf16>
    %c0_7 = arith.constant 0 : index
    %c0_8 = arith.constant 0 : index
    %13 = vector.load %arg4[%c0_7, %c0_8] : memref<128x128xbf16, #tpu.memory_space<vmem>>, vector<128x128xbf16>
    %cst_9 = arith.constant dense<0.000000e+00> : vector<8x128xf32>
    %14 = tpu.matmul %12, %13, %cst_9 {dimension_numbers = #tpu.dot_dimension_numbers<[1], [0], [0], [1], [0, 0, 1, 1], [], []>} : vector<8x128xbf16>, vector<128x128xbf16>, vector<8x128xf32> -> vector<8x128xf32>
    %c0_10 = arith.constant 0 : index
    %c0_11 = arith.constant 0 : index
    %15 = vector.load %arg5[%c0_10, %c0_11] : memref<1x128xf32, #tpu.memory_space<vmem>>, vector<1x128xf32>
    %16 = vector.broadcast %15 : vector<1x128xf32> to vector<8x128xf32>
    %17 = arith.addf %14, %16 : vector<8x128xf32>
    %cst_12 = arith.constant 0.000000e+00 : f32
    %18 = vector.broadcast %cst_12 : f32 to vector<8x128xf32>
    %19 = arith.cmpf ogt, %17, %18 : vector<8x128xf32>
    %cst_13 = arith.constant 1.000000e-01 : f32
    %20 = vector.broadcast %cst_13 : f32 to vector<8x128xf32>
    %21 = arith.mulf %20, %17 : vector<8x128xf32>
    %22 = arith.select %19, %17, %21 : vector<8x128xi1>, vector<8x128xf32>
    %23 = arith.truncf %22 : vector<8x128xf32> to vector<8x128xbf16>
    %c0_14 = arith.constant 0 : index
    %c0_15 = arith.constant 0 : index
    %24 = vector.load %arg6[%c0_14, %c0_15] : memref<128x128xbf16, #tpu.memory_space<vmem>>, vector<128x128xbf16>
    %cst_16 = arith.constant dense<0.000000e+00> : vector<8x128xf32>
    %25 = tpu.matmul %23, %24, %cst_16 {dimension_numbers = #tpu.dot_dimension_numbers<[1], [0], [0], [1], [0, 0, 1, 1], [], []>} : vector<8x128xbf16>, vector<128x128xbf16>, vector<8x128xf32> -> vector<8x128xf32>
    %c0_17 = arith.constant 0 : index
    %c0_18 = arith.constant 0 : index
    %26 = vector.load %arg7[%c0_17, %c0_18] : memref<1x128xf32, #tpu.memory_space<vmem>>, vector<1x128xf32>
    %27 = vector.broadcast %26 : vector<1x128xf32> to vector<8x128xf32>
    %28 = arith.addf %25, %27 : vector<8x128xf32>
    %cst_19 = arith.constant 0.000000e+00 : f32
    %29 = vector.broadcast %cst_19 : f32 to vector<8x128xf32>
    %30 = arith.cmpf ogt, %28, %29 : vector<8x128xf32>
    %cst_20 = arith.constant 1.000000e-01 : f32
    %31 = vector.broadcast %cst_20 : f32 to vector<8x128xf32>
    %32 = arith.mulf %31, %28 : vector<8x128xf32>
    %33 = arith.select %30, %28, %32 : vector<8x128xi1>, vector<8x128xf32>
    %34 = arith.truncf %33 : vector<8x128xf32> to vector<8x128xbf16>
    %c0_21 = arith.constant 0 : index
    %c0_22 = arith.constant 0 : index
    %35 = vector.load %arg8[%c0_21, %c0_22] : memref<128x128xbf16, #tpu.memory_space<vmem>>, vector<128x128xbf16>
    %cst_23 = arith.constant dense<0.000000e+00> : vector<8x128xf32>
    %36 = tpu.matmul %34, %35, %cst_23 {dimension_numbers = #tpu.dot_dimension_numbers<[1], [0], [0], [1], [0, 0, 1, 1], [], []>} : vector<8x128xbf16>, vector<128x128xbf16>, vector<8x128xf32> -> vector<8x128xf32>
    %c0_24 = arith.constant 0 : index
    %c0_25 = arith.constant 0 : index
    %37 = vector.load %arg9[%c0_24, %c0_25] : memref<1x128xf32, #tpu.memory_space<vmem>>, vector<1x128xf32>
    %38 = vector.broadcast %37 : vector<1x128xf32> to vector<8x128xf32>
    %39 = arith.addf %36, %38 : vector<8x128xf32>
    %c0_26 = arith.constant 0 : index
    %c0_27 = arith.constant 0 : index
    %40 = vector.load %arg10[%c0_26, %c0_27] : memref<8x128xf32, #tpu.memory_space<vmem>>, vector<8x128xf32>
    tpu.vector_store %arg10[%c0_26, %c0_27], %39 {strides = array<i32>} : memref<8x128xf32, #tpu.memory_space<vmem>>, vector<8x128xf32>,
    return
  }
  func.func @transform_0(%arg0: i32) -> (i32, i32) {
    %c0_i32 = arith.constant 0 : i32
    %c0_i32_0 = arith.constant 0 : i32
    return %arg0, %c0_i32 : i32, i32
  }
  func.func @transform_1(%arg0: i32) -> (i32, i32) {
    %c0_i32 = arith.constant 0 : i32
    %c0_i32_0 = arith.constant 0 : i32
    %c0_i32_1 = arith.constant 0 : i32
    return %c0_i32, %c0_i32_0 : i32, i32
  }
  func.func @transform_2(%arg0: i32) -> (i32, i32) {
    %c0_i32 = arith.constant 0 : i32
    %c0_i32_0 = arith.constant 0 : i32
    %c0_i32_1 = arith.constant 0 : i32
    return %c0_i32, %c0_i32_0 : i32, i32
  }
  func.func @transform_3(%arg0: i32) -> (i32, i32) {
    %c0_i32 = arith.constant 0 : i32
    %c0_i32_0 = arith.constant 0 : i32
    %c0_i32_1 = arith.constant 0 : i32
    return %c0_i32, %c0_i32_0 : i32, i32
  }
  func.func @transform_4(%arg0: i32) -> (i32, i32) {
    %c0_i32 = arith.constant 0 : i32
    %c0_i32_0 = arith.constant 0 : i32
    %c0_i32_1 = arith.constant 0 : i32
    return %c0_i32, %c0_i32_0 : i32, i32
  }
  func.func @transform_5(%arg0: i32) -> (i32, i32) {
    %c0_i32 = arith.constant 0 : i32
    %c0_i32_0 = arith.constant 0 : i32
    %c0_i32_1 = arith.constant 0 : i32
    return %c0_i32, %c0_i32_0 : i32, i32
  }
  func.func @transform_6(%arg0: i32) -> (i32, i32) {
    %c0_i32 = arith.constant 0 : i32
    %c0_i32_0 = arith.constant 0 : i32
    %c0_i32_1 = arith.constant 0 : i32
    return %c0_i32, %c0_i32_0 : i32, i32
  }
  func.func @transform_7(%arg0: i32) -> (i32, i32) {
    %c0_i32 = arith.constant 0 : i32
    %c0_i32_0 = arith.constant 0 : i32
    %c0_i32_1 = arith.constant 0 : i32
    return %c0_i32, %c0_i32_0 : i32, i32
  }
  func.func @transform_8(%arg0: i32) -> (i32, i32) {
    %c0_i32 = arith.constant 0 : i32
    %c0_i32_0 = arith.constant 0 : i32
    %c0_i32_1 = arith.constant 0 : i32
    return %c0_i32, %c0_i32_0 : i32, i32
  }
  func.func @transform_9(%arg0: i32) -> (i32, i32) {
    %c0_i32 = arith.constant 0 : i32
    %c0_i32_0 = arith.constant 0 : i32
    return %arg0, %c0_i32 : i32, i32
  }
}

</mosaic_0001>

<llo_original>
// kernel: tpu_custom_call.1
$region0: #{tpu_custom_call.1}
  #allocation0 [shape = 'u32[]', space=smem, size = 0x4, offset = 0x4, fixed_abs, tag = 'smem constant byte address 0x4 - core index']
  #allocation1 [shape = 'u32[144,128]{1,0:T(1,128)}', space=vmem, size = 0x12000, scoped, tag = 'internal scratch']
  %s0 = inlined_call_operand.hbm [shape: f32[8,32], index: 0, kind: input, shape index: {}]
  %s1 = inlined_call_operand.hbm [shape: bf16[32,128], index: 1, kind: input, shape index: {}]
  %s2 = inlined_call_operand.vmem [shape: f32[1,128], index: 2, kind: input, shape index: {}]
  %s3 = inlined_call_operand.hbm [shape: bf16[128,128], index: 3, kind: input, shape index: {}]
  %s4 = inlined_call_operand.vmem [shape: f32[1,128], index: 4, kind: input, shape index: {}]
  %s5 = inlined_call_operand.hbm [shape: bf16[128,128], index: 5, kind: input, shape index: {}]
  %s6 = inlined_call_operand.vmem [shape: f32[1,128], index: 6, kind: input, shape index: {}]
  %s7 = inlined_call_operand.hbm [shape: bf16[128,128], index: 7, kind: input, shape index: {}]
  %s8 = inlined_call_operand.vmem [shape: f32[1,128], index: 8, kind: input, shape index: {}]
  %s9 = inlined_call_operand.hbm [shape: f32[8,128], index: 9, kind: output, shape index: {}]
  %s10 = sld [smem:[#allocation0]]
  $region66: #{tpu_custom_call.1} parent=0
    _
  %s12 = ssub.s32 1, %s10
  %s13 = scalar_select 0, %s12, %s10
  $region1: #{tpu_custom_call.1} parent=0
    #allocation2 [shape = 'u8[4096]{0}', space=vmem, size = 0x1000, scoped, tag = 'input window, operand 0, single buffered']
    #allocation3 [shape = 's32[1]{0}', space=sflag, size = 0x4, scoped, tag = 'scoped memory for tpu_custom_call.1']
    #allocation4 [shape = 's32[1]{0}', space=sflag, size = 0x4, scoped, tag = 'scoped memory for tpu_custom_call.1']
    #allocation5 [shape = 'u8[8192]{0}', space=vmem, size = 0x2000, scoped, tag = 'input window, operand 1, single buffered']
    #allocation6 [shape = 's32[1]{0}', space=sflag, size = 0x4, scoped, tag = 'scoped memory for tpu_custom_call.1']
    #allocation7 [shape = 'u8[32768]{0}', space=vmem, size = 0x8000, scoped, tag = 'input window, operand 3, single buffered']
    #allocation8 [shape = 'u8[32768]{0}', space=vmem, size = 0x8000, scoped, tag = 'input window, operand 5, single buffered']
    #allocation9 [shape = 's32[1]{0}', space=sflag, size = 0x4, scoped, tag = 'scoped memory for tpu_custom_call.1']
    #allocation10 [shape = 'u8[32768]{0}', space=vmem, size = 0x8000, scoped, tag = 'input window, operand 7, single buffered']
    #allocation11 [shape = 'u8[4096]{0}', space=vmem, size = 0x1000, scoped, tag = 'output window, operand 0, single buffered']
    %14 = vsyncpa [#allocation3], 0
    %15 = vsyncpa [#allocation6], 0
    %16 = vsyncpa [#allocation9], 0
    %17 = vsyncpa [#allocation4], 0
    // Predicated region
    $region2: #{tpu_custom_call.1} parent=1 // pred_check
      _
    $region3: #{tpu_custom_call.1} parent=1 // pred_check_branch
      %19 = sbr.rel (0) target = $region5
    $region4: #{tpu_custom_call.1} parent=1 // pred_region
      %s21 = ssub.s32 128, 128
      %22 = vsyncadd [#allocation3], %s21
      %s24 = sshll.u32 [#allocation2], 4
      %s25 = int_to_ptr.vmem [resolvable:$true] %s24
      %27 = dma.hbm_to_vmem [thread:$0]  %s0, 128, %s25, [#allocation3]
    $region5: #{tpu_custom_call.1} parent=1 // pred_fallthru
      _
    // Predicated region
    $region6: #{tpu_custom_call.1} parent=1 // pred_check
      _
    $region7: #{tpu_custom_call.1} parent=1 // pred_check_branch
      %29 = sbr.rel (0) target = $region9
    $region8: #{tpu_custom_call.1} parent=1 // pred_region
      %s31 = ssub.s32 256, 256
      %32 = vsyncadd [#allocation6], %s31
      %s33 = sshll.u32 [#allocation5], 4
      %s34 = int_to_ptr.vmem [resolvable:$true] %s33
      %39 = dma.hbm_to_vmem [thread:$0]  %s1, 256, %s34, [#allocation6], 64, 64, 4
    $region9: #{tpu_custom_call.1} parent=1 // pred_fallthru
      _
    // Predicated region
    $region10: #{tpu_custom_call.1} parent=1 // pred_check
      _
    $region11: #{tpu_custom_call.1} parent=1 // pred_check_branch
      %41 = sbr.rel (0) target = $region13
    $region12: #{tpu_custom_call.1} parent=1 // pred_region
      _
    $region13: #{tpu_custom_call.1} parent=1 // pred_fallthru
      _
    // Predicated region
    $region14: #{tpu_custom_call.1} parent=1 // pred_check
      _
    $region15: #{tpu_custom_call.1} parent=1 // pred_check_branch
      %43 = sbr.rel (0) target = $region17
    $region16: #{tpu_custom_call.1} parent=1 // pred_region
      %s45 = ssub.s32 1024, 1024
      %46 = vsyncadd [#allocation6], %s45
      %s47 = sshll.u32 [#allocation7], 4
      %s48 = int_to_ptr.vmem [resolvable:$true] %s47
      %53 = dma.hbm_to_vmem [thread:$0]  %s3, 1024, %s48, [#allocation6], 64, 64, 4
    $region17: #{tpu_custom_call.1} parent=1 // pred_fallthru
      _
    // Predicated region
    $region18: #{tpu_custom_call.1} parent=1 // pred_check
      _
    $region19: #{tpu_custom_call.1} parent=1 // pred_check_branch
      %55 = sbr.rel (0) target = $region21
    $region20: #{tpu_custom_call.1} parent=1 // pred_region
      _
    $region21: #{tpu_custom_call.1} parent=1 // pred_fallthru
      _
    // Predicated region
    $region22: #{tpu_custom_call.1} parent=1 // pred_check
      _
    $region23: #{tpu_custom_call.1} parent=1 // pred_check_branch
      %57 = sbr.rel (0) target = $region25
    $region24: #{tpu_custom_call.1} parent=1 // pred_region
      %s59 = ssub.s32 1024, 1024
      %60 = vsyncadd [#allocation9], %s59
      %s61 = sshll.u32 [#allocation8], 4
      %s62 = int_to_ptr.vmem [resolvable:$true] %s61
      %67 = dma.hbm_to_vmem [thread:$0]  %s5, 1024, %s62, [#allocation9], 64, 64, 4
    $region25: #{tpu_custom_call.1} parent=1 // pred_fallthru
      _
    // Predicated region
    $region26: #{tpu_custom_call.1} parent=1 // pred_check
      _
    $region27: #{tpu_custom_call.1} parent=1 // pred_check_branch
      %69 = sbr.rel (0) target = $region29
    $region28: #{tpu_custom_call.1} parent=1 // pred_region
      _
    $region29: #{tpu_custom_call.1} parent=1 // pred_fallthru
      _
    // Predicated region
    $region30: #{tpu_custom_call.1} parent=1 // pred_check
      _
    $region31: #{tpu_custom_call.1} parent=1 // pred_check_branch
      %71 = sbr.rel (0) target = $region33
    $region32: #{tpu_custom_call.1} parent=1 // pred_region
      %s73 = ssub.s32 1024, 1024
      %74 = vsyncadd [#allocation9], %s73
      %s75 = sshll.u32 [#allocation10], 4
      %s76 = int_to_ptr.vmem [resolvable:$true] %s75
      %81 = dma.hbm_to_vmem [thread:$0]  %s7, 1024, %s76, [#allocation9], 64, 64, 4
    $region33: #{tpu_custom_call.1} parent=1 // pred_fallthru
      _
    // Predicated region
    $region34: #{tpu_custom_call.1} parent=1 // pred_check
      _
    $region35: #{tpu_custom_call.1} parent=1 // pred_check_branch
      %83 = sbr.rel (0) target = $region37
    $region36: #{tpu_custom_call.1} parent=1 // pred_region
      _
    $region37: #{tpu_custom_call.1} parent=1 // pred_fallthru
      _
    // Predicated region
    $region38: #{tpu_custom_call.1} parent=1 // pred_check
      _
    $region39: #{tpu_custom_call.1} parent=1 // pred_check_branch
      %85 = sbr.rel (0) target = $region41
    $region40: #{tpu_custom_call.1} parent=1 // pred_region
      %86 = dma.done [#allocation3], 128
    $region41: #{tpu_custom_call.1} parent=1 // pred_fallthru
      _
    // Predicated region
    $region42: #{tpu_custom_call.1} parent=1 // pred_check
      _
    $region43: #{tpu_custom_call.1} parent=1 // pred_check_branch
      %88 = sbr.rel (0) target = $region45
    $region44: #{tpu_custom_call.1} parent=1 // pred_region
      %89 = dma.done [#allocation6], 256
    $region45: #{tpu_custom_call.1} parent=1 // pred_fallthru
      _
    // Predicated region
    $region46: #{tpu_custom_call.1} parent=1 // pred_check
      _
    $region47: #{tpu_custom_call.1} parent=1 // pred_check_branch
      %91 = sbr.rel (0) target = $region49
    $region48: #{tpu_custom_call.1} parent=1 // pred_region
      %92 = dma.done [#allocation6], 1024
    $region49: #{tpu_custom_call.1} parent=1 // pred_fallthru
      _
    // Predicated region
    $region50: #{tpu_custom_call.1} parent=1 // pred_check
      _
    $region51: #{tpu_custom_call.1} parent=1 // pred_check_branch
      %94 = sbr.rel (0) target = $region53
    $region52: #{tpu_custom_call.1} parent=1 // pred_region
      %95 = dma.done [#allocation9], 1024
    $region53: #{tpu_custom_call.1} parent=1 // pred_fallthru
      _
    // Predicated region
    $region54: #{tpu_custom_call.1} parent=1 // pred_check
      _
    $region55: #{tpu_custom_call.1} parent=1 // pred_check_branch
      %97 = sbr.rel (0) target = $region57
    $region56: #{tpu_custom_call.1} parent=1 // pred_region
      %98 = dma.done [#allocation9], 1024
    $region57: #{tpu_custom_call.1} parent=1 // pred_fallthru
      _
    %v100 = vld [vmem:[#allocation2] sm:$0xff]
    %v101 = vpack.c.bf16 %v100, %v100
    %v102 = vld [vmem:[#allocation5] sm:$0xf]
    %v103 = vld [vmem:[#allocation5 + $0x4] sm:$0xf]
    %v104 = vld [vmem:[#allocation5 + $0x8] sm:$0xf]
    %v105 = vld [vmem:[#allocation5 + $0xc] sm:$0xf]
    %v106 = vld [vmem:[%s2] sm:$0x1]
    %v108 = vlaneseq
    %v109 = vshrl.u32 %v108, 7
    %v110 = vsub.s32 0, %v109
    %v111 = vrot.slane %v106, %v110
    %v117 = vunpack.c.l.b16 %v102
    %v118 = vunpack.c.l.b16 %v103
    %v119 = vunpack.c.l.b16 %v104
    %v120 = vunpack.c.l.b16 %v105
    %v121 = vpack.c.b16 %v118, %v117
    %v122 = vpack.c.b16 %v120, %v119
    %vm125 = vcmask 261120
    %v127 = vsel %vm125, %v101, 0
    %129 = vmatprep.subr.bf16.mxu0 0
    %130 = vmatpush1.bf16.msra.mxu0 0
    %131 = vmatprep.subr.bf16.mxu0 0
    %132 = vmatpush1.bf16.msra.mxu0 0
    %133 = vmatprep.subr.bf16.mxu0 0
    %134 = vmatpush1.bf16.msra.mxu0 0
    %135 = vmatprep.subr.bf16.mxu0 0
    %136 = vmatpush1.bf16.msra.mxu0 0
    %137 = vmatprep.subr.bf16.mxu0 0
    %138 = vmatpush1.bf16.msra.mxu0 0
    %139 = vmatprep.subr.bf16.mxu0 0
    %140 = vmatpush1.bf16.msra.mxu0 0
    %141 = vmatprep.subr.bf16.mxu0 0
    %142 = vmatpush1.bf16.msra.mxu0 %v122
    %143 = vmatprep.subr.bf16.mxu0 0
    %144 = vmatpush1.bf16.msra.mxu0 %v121
    %145 = vmatprep.subr.bf16.mxu0 0
    %146 = vmatpush2.bf16.msra.mxu0 0
    %147 = vmatprep.subr.bf16.mxu0 0
    %148 = vmatpush2.bf16.msra.mxu0 0
    %149 = vmatprep.subr.bf16.mxu0 0
    %150 = vmatpush2.bf16.msra.mxu0 0
    %151 = vmatprep.subr.bf16.mxu0 0
    %152 = vmatpush2.bf16.msra.mxu0 0
    %153 = vmatprep.subr.bf16.mxu0 0
    %154 = vmatpush2.bf16.msra.mxu0 0
    %155 = vmatprep.subr.bf16.mxu0 0
    %156 = vmatpush2.bf16.msra.mxu0 0
    %157 = vmatprep.subr.bf16.mxu0 0
    %158 = vmatpush2.bf16.msra.mxu0 0
    %159 = vmatprep.subr.bf16.mxu0 0
    %160 = vmatpush2.bf16.msra.mxu0 0
    %161 = vmatprep.mubr.bf16.mxu0 0
    %162 = vmatmul.mubr.bf16.gmra.mxu0 %v127
    %v163 = vpop.f32.mrf.mxu0
    %v164 = vadd.f32 %v111, %v163
    %v165 = vpop.f32.mrf.mxu0
    %v166 = vpop.f32.mrf.mxu0
    %v167 = vpop.f32.mrf.mxu0
    %168 = vdwg.mxu0
    %vm169 = vcmp.gt.f32.partialorder %v164, 0.0
    %v170 = vmul.f32 %v164, 0.1
    %v171 = vsel %vm169, %v164, %v170
    %v172 = vpack.c.bf16 %v171, %v171
    %v173 = vld [vmem:[#allocation7] sm:$0xf]
    %v174 = vld [vmem:[#allocation7 + $0x4] sm:$0xf]
    %v175 = vld [vmem:[#allocation7 + $0x8] sm:$0xf]
    %v176 = vld [vmem:[#allocation7 + $0xc] sm:$0xf]
    %v177 = vld [vmem:[#allocation7 + $0x10] sm:$0xf]
    %v178 = vld [vmem:[#allocation7 + $0x14] sm:$0xf]
    %v179 = vld [vmem:[#allocation7 + $0x18] sm:$0xf]
    %v180 = vld [vmem:[#allocation7 + $0x1c] sm:$0xf]
    %v181 = vld [vmem:[#allocation7 + $0x20] sm:$0xf]
    %v182 = vld [vmem:[#allocation7 + $0x24] sm:$0xf]
    %v183 = vld [vmem:[#allocation7 + $0x28] sm:$0xf]
    %v184 = vld [vmem:[#allocation7 + $0x2c] sm:$0xf]
    %v185 = vld [vmem:[#allocation7 + $0x30] sm:$0xf]
    %v186 = vld [vmem:[#allocation7 + $0x34] sm:$0xf]
    %v187 = vld [vmem:[#allocation7 + $0x38] sm:$0xf]
    %v188 = vld [vmem:[#allocation7 + $0x3c] sm:$0xf]
    %v189 = vld [vmem:[%s4] sm:$0x1]
    %v191 = vlaneseq
    %v192 = vshrl.u32 %v191, 7
    %v193 = vsub.s32 0, %v192
    %v194 = vrot.slane %v189, %v193
    %v212 = vunpack.c.l.b16 %v173
    %v213 = vunpack.c.l.b16 %v174
    %v214 = vunpack.c.l.b16 %v175
    %v215 = vunpack.c.l.b16 %v176
    %v216 = vunpack.c.l.b16 %v177
    %v217 = vunpack.c.l.b16 %v178
    %v218 = vunpack.c.l.b16 %v179
    %v219 = vunpack.c.l.b16 %v180
    %v220 = vunpack.c.l.b16 %v181
    %v221 = vunpack.c.l.b16 %v182
    %v222 = vunpack.c.l.b16 %v183
    %v223 = vunpack.c.l.b16 %v184
    %v224 = vunpack.c.l.b16 %v185
    %v225 = vunpack.c.l.b16 %v186
    %v226 = vunpack.c.l.b16 %v187
    %v227 = vunpack.c.l.b16 %v188
    %v228 = vpack.c.b16 %v213, %v212
    %v229 = vpack.c.b16 %v215, %v214
    %v230 = vpack.c.b16 %v217, %v216
    %v231 = vpack.c.b16 %v219, %v218
    %v232 = vpack.c.b16 %v221, %v220
    %v233 = vpack.c.b16 %v223, %v222
    %v234 = vpack.c.b16 %v225, %v224
    %v235 = vpack.c.b16 %v227, %v226
    %244 = vmatprep.subr.bf16.mxu0 0
    %245 = vmatpush1.bf16.msra.mxu0 %v235
    %246 = vmatprep.subr.bf16.mxu0 0
    %247 = vmatpush1.bf16.msra.mxu0 %v234
    %248 = vmatprep.subr.bf16.mxu0 0
    %249 = vmatpush1.bf16.msra.mxu0 %v233
    %250 = vmatprep.subr.bf16.mxu0 0
    %251 = vmatpush1.bf16.msra.mxu0 %v232
    %252 = vmatprep.subr.bf16.mxu0 0
    %253 = vmatpush1.bf16.msra.mxu0 %v231
    %254 = vmatprep.subr.bf16.mxu0 0
    %255 = vmatpush1.bf16.msra.mxu0 %v230
    %256 = vmatprep.subr.bf16.mxu0 0
    %257 = vmatpush1.bf16.msra.mxu0 %v229
    %258 = vmatprep.subr.bf16.mxu0 0
    %259 = vmatpush1.bf16.msra.mxu0 %v228
    %260 = vmatprep.subr.bf16.mxu0 0
    %261 = vmatpush2.bf16.msra.mxu0 0
    %262 = vmatprep.subr.bf16.mxu0 0
    %263 = vmatpush2.bf16.msra.mxu0 0
    %264 = vmatprep.subr.bf16.mxu0 0
    %265 = vmatpush2.bf16.msra.mxu0 0
    %266 = vmatprep.subr.bf16.mxu0 0
    %267 = vmatpush2.bf16.msra.mxu0 0
    %268 = vmatprep.subr.bf16.mxu0 0
    %269 = vmatpush2.bf16.msra.mxu0 0
    %270 = vmatprep.subr.bf16.mxu0 0
    %271 = vmatpush2.bf16.msra.mxu0 0
    %272 = vmatprep.subr.bf16.mxu0 0
    %273 = vmatpush2.bf16.msra.mxu0 0
    %274 = vmatprep.subr.bf16.mxu0 0
    %275 = vmatpush2.bf16.msra.mxu0 0
    %276 = vmatprep.mubr.bf16.mxu0 0
    %277 = vmatmul.mubr.bf16.gmra.mxu0 %v172
    %v278 = vpop.f32.mrf.mxu0
    %v279 = vadd.f32 %v194, %v278
    %v280 = vpop.f32.mrf.mxu0
    %v281 = vpop.f32.mrf.mxu0
    %v282 = vpop.f32.mrf.mxu0
    %283 = vdwg.mxu0
    %vm284 = vcmp.gt.f32.partialorder %v279, 0.0
    %v285 = vmul.f32 %v279, 0.1
    %v286 = vsel %vm284, %v279, %v285
    %v287 = vpack.c.bf16 %v286, %v286
    %v288 = vld [vmem:[#allocation8] sm:$0xf]
    %v289 = vld [vmem:[#allocation8 + $0x4] sm:$0xf]
    %v290 = vld [vmem:[#allocation8 + $0x8] sm:$0xf]
    %v291 = vld [vmem:[#allocation8 + $0xc] sm:$0xf]
    %v292 = vld [vmem:[#allocation8 + $0x10] sm:$0xf]
    %v293 = vld [vmem:[#allocation8 + $0x14] sm:$0xf]
    %v294 = vld [vmem:[#allocation8 + $0x18] sm:$0xf]
    %v295 = vld [vmem:[#allocation8 + $0x1c] sm:$0xf]
    %v296 = vld [vmem:[#allocation8 + $0x20] sm:$0xf]
    %v297 = vld [vmem:[#allocation8 + $0x24] sm:$0xf]
    %v298 = vld [vmem:[#allocation8 + $0x28] sm:$0xf]
    %v299 = vld [vmem:[#allocation8 + $0x2c] sm:$0xf]
    %v300 = vld [vmem:[#allocation8 + $0x30] sm:$0xf]
    %v301 = vld [vmem:[#allocation8 + $0x34] sm:$0xf]
    %v302 = vld [vmem:[#allocation8 + $0x38] sm:$0xf]
    %v303 = vld [vmem:[#allocation8 + $0x3c] sm:$0xf]
    %v304 = vld [vmem:[%s6] sm:$0x1]
    %v306 = vlaneseq
    %v307 = vshrl.u32 %v306, 7
    %v308 = vsub.s32 0, %v307
    %v309 = vrot.slane %v304, %v308
    %v327 = vunpack.c.l.b16 %v288
    %v328 = vunpack.c.l.b16 %v289
    %v329 = vunpack.c.l.b16 %v290
    %v330 = vunpack.c.l.b16 %v291
    %v331 = vunpack.c.l.b16 %v292
    %v332 = vunpack.c.l.b16 %v293
    %v333 = vunpack.c.l.b16 %v294
    %v334 = vunpack.c.l.b16 %v295
    %v335 = vunpack.c.l.b16 %v296
    %v336 = vunpack.c.l.b16 %v297
    %v337 = vunpack.c.l.b16 %v298
    %v338 = vunpack.c.l.b16 %v299
    %v339 = vunpack.c.l.b16 %v300
    %v340 = vunpack.c.l.b16 %v301
    %v341 = vunpack.c.l.b16 %v302
    %v342 = vunpack.c.l.b16 %v303
    %v343 = vpack.c.b16 %v328, %v327
    %v344 = vpack.c.b16 %v330, %v329
    %v345 = vpack.c.b16 %v332, %v331
    %v346 = vpack.c.b16 %v334, %v333
    %v347 = vpack.c.b16 %v336, %v335
    %v348 = vpack.c.b16 %v338, %v337
    %v349 = vpack.c.b16 %v340, %v339
    %v350 = vpack.c.b16 %v342, %v341
    %359 = vmatprep.subr.bf16.mxu0 0
    %360 = vmatpush1.bf16.msra.mxu0 %v350
    %361 = vmatprep.subr.bf16.mxu0 0
    %362 = vmatpush1.bf16.msra.mxu0 %v349
    %363 = vmatprep.subr.bf16.mxu0 0
    %364 = vmatpush1.bf16.msra.mxu0 %v348
    %365 = vmatprep.subr.bf16.mxu0 0
    %366 = vmatpush1.bf16.msra.mxu0 %v347
    %367 = vmatprep.subr.bf16.mxu0 0
    %368 = vmatpush1.bf16.msra.mxu0 %v346
    %369 = vmatprep.subr.bf16.mxu0 0
    %370 = vmatpush1.bf16.msra.mxu0 %v345
    %371 = vmatprep.subr.bf16.mxu0 0
    %372 = vmatpush1.bf16.msra.mxu0 %v344
    %373 = vmatprep.subr.bf16.mxu0 0
    %374 = vmatpush1.bf16.msra.mxu0 %v343
    %375 = vmatprep.subr.bf16.mxu0 0
    %376 = vmatpush2.bf16.msra.mxu0 0
    %377 = vmatprep.subr.bf16.mxu0 0
    %378 = vmatpush2.bf16.msra.mxu0 0
    %379 = vmatprep.subr.bf16.mxu0 0
    %380 = vmatpush2.bf16.msra.mxu0 0
    %381 = vmatprep.subr.bf16.mxu0 0
    %382 = vmatpush2.bf16.msra.mxu0 0
    %383 = vmatprep.subr.bf16.mxu0 0
    %384 = vmatpush2.bf16.msra.mxu0 0
    %385 = vmatprep.subr.bf16.mxu0 0
    %386 = vmatpush2.bf16.msra.mxu0 0
    %387 = vmatprep.subr.bf16.mxu0 0
    %388 = vmatpush2.bf16.msra.mxu0 0
    %389 = vmatprep.subr.bf16.mxu0 0
    %390 = vmatpush2.bf16.msra.mxu0 0
    %391 = vmatprep.mubr.bf16.mxu0 0
    %392 = vmatmul.mubr.bf16.gmra.mxu0 %v287
    %v393 = vpop.f32.mrf.mxu0
    %v394 = vadd.f32 %v309, %v393
    %v395 = vpop.f32.mrf.mxu0
    %v396 = vpop.f32.mrf.mxu0
    %v397 = vpop.f32.mrf.mxu0
    %398 = vdwg.mxu0
    %vm399 = vcmp.gt.f32.partialorder %v394, 0.0
    %v400 = vmul.f32 %v394, 0.1
    %v401 = vsel %vm399, %v394, %v400
    %v402 = vpack.c.bf16 %v401, %v401
    %v403 = vld [vmem:[#allocation10] sm:$0xf]
    %v404 = vld [vmem:[#allocation10 + $0x4] sm:$0xf]
    %v405 = vld [vmem:[#allocation10 + $0x8] sm:$0xf]
    %v406 = vld [vmem:[#allocation10 + $0xc] sm:$0xf]
    %v407 = vld [vmem:[#allocation10 + $0x10] sm:$0xf]
    %v408 = vld [vmem:[#allocation10 + $0x14] sm:$0xf]
    %v409 = vld [vmem:[#allocation10 + $0x18] sm:$0xf]
    %v410 = vld [vmem:[#allocation10 + $0x1c] sm:$0xf]
    %v411 = vld [vmem:[#allocation10 + $0x20] sm:$0xf]
    %v412 = vld [vmem:[#allocation10 + $0x24] sm:$0xf]
    %v413 = vld [vmem:[#allocation10 + $0x28] sm:$0xf]
    %v414 = vld [vmem:[#allocation10 + $0x2c] sm:$0xf]
    %v415 = vld [vmem:[#allocation10 + $0x30] sm:$0xf]
    %v416 = vld [vmem:[#allocation10 + $0x34] sm:$0xf]
    %v417 = vld [vmem:[#allocation10 + $0x38] sm:$0xf]
    %v418 = vld [vmem:[#allocation10 + $0x3c] sm:$0xf]
    %v419 = vld [vmem:[%s8] sm:$0x1]
    %v421 = vlaneseq
    %v422 = vshrl.u32 %v421, 7
    %v423 = vsub.s32 0, %v422
    %v424 = vrot.slane %v419, %v423
    %v442 = vunpack.c.l.b16 %v403
    %v443 = vunpack.c.l.b16 %v404
    %v444 = vunpack.c.l.b16 %v405
    %v445 = vunpack.c.l.b16 %v406
    %v446 = vunpack.c.l.b16 %v407
    %v447 = vunpack.c.l.b16 %v408
    %v448 = vunpack.c.l.b16 %v409
    %v449 = vunpack.c.l.b16 %v410
    %v450 = vunpack.c.l.b16 %v411
    %v451 = vunpack.c.l.b16 %v412
    %v452 = vunpack.c.l.b16 %v413
    %v453 = vunpack.c.l.b16 %v414
    %v454 = vunpack.c.l.b16 %v415
    %v455 = vunpack.c.l.b16 %v416
    %v456 = vunpack.c.l.b16 %v417
    %v457 = vunpack.c.l.b16 %v418
    %v458 = vpack.c.b16 %v443, %v442
    %v459 = vpack.c.b16 %v445, %v444
    %v460 = vpack.c.b16 %v447, %v446
    %v461 = vpack.c.b16 %v449, %v448
    %v462 = vpack.c.b16 %v451, %v450
    %v463 = vpack.c.b16 %v453, %v452
    %v464 = vpack.c.b16 %v455, %v454
    %v465 = vpack.c.b16 %v457, %v456
    %474 = vmatprep.subr.bf16.mxu0 0
    %475 = vmatpush1.bf16.msra.mxu0 %v465
    %476 = vmatprep.subr.bf16.mxu0 0
    %477 = vmatpush1.bf16.msra.mxu0 %v464
    %478 = vmatprep.subr.bf16.mxu0 0
    %479 = vmatpush1.bf16.msra.mxu0 %v463
    %480 = vmatprep.subr.bf16.mxu0 0
    %481 = vmatpush1.bf16.msra.mxu0 %v462
    %482 = vmatprep.subr.bf16.mxu0 0
    %483 = vmatpush1.bf16.msra.mxu0 %v461
    %484 = vmatprep.subr.bf16.mxu0 0
    %485 = vmatpush1.bf16.msra.mxu0 %v460
    %486 = vmatprep.subr.bf16.mxu0 0
    %487 = vmatpush1.bf16.msra.mxu0 %v459
    %488 = vmatprep.subr.bf16.mxu0 0
    %489 = vmatpush1.bf16.msra.mxu0 %v458
    %490 = vmatprep.subr.bf16.mxu0 0
    %491 = vmatpush2.bf16.msra.mxu0 0
    %492 = vmatprep.subr.bf16.mxu0 0
    %493 = vmatpush2.bf16.msra.mxu0 0
    %494 = vmatprep.subr.bf16.mxu0 0
    %495 = vmatpush2.bf16.msra.mxu0 0
    %496 = vmatprep.subr.bf16.mxu0 0
    %497 = vmatpush2.bf16.msra.mxu0 0
    %498 = vmatprep.subr.bf16.mxu0 0
    %499 = vmatpush2.bf16.msra.mxu0 0
    %500 = vmatprep.subr.bf16.mxu0 0
    %501 = vmatpush2.bf16.msra.mxu0 0
    %502 = vmatprep.subr.bf16.mxu0 0
    %503 = vmatpush2.bf16.msra.mxu0 0
    %504 = vmatprep.subr.bf16.mxu0 0
    %505 = vmatpush2.bf16.msra.mxu0 0
    %506 = vmatprep.mubr.bf16.mxu0 0
    %507 = vmatmul.mubr.bf16.gmra.mxu0 %v402
    %v508 = vpop.f32.mrf.mxu0
    %v509 = vadd.f32 %v424, %v508
    %v510 = vpop.f32.mrf.mxu0
    %v511 = vpop.f32.mrf.mxu0
    %v512 = vpop.f32.mrf.mxu0
    %513 = vdwg.mxu0
    %514 = vst [vmem:[#allocation11] sm:$0xff] %v509
    // Predicated region
    $region58: #{tpu_custom_call.1} parent=1 // pred_check
      _
    $region59: #{tpu_custom_call.1} parent=1 // pred_check_branch
      %516 = sbr.rel (0) target = $region61
    $region60: #{tpu_custom_call.1} parent=1 // pred_region
      %s518 = ssub.s32 128, 128
      %519 = vsyncadd [#allocation4], %s518
      %s521 = sshll.u32 [#allocation11], 4
      %s522 = int_to_ptr.vmem [resolvable:$true] %s521
      %524 = dma.vmem_to_hbm [thread:$0]  %s522, 128, %s9, [#allocation4]
    $region61: #{tpu_custom_call.1} parent=1 // pred_fallthru
      _
    // Predicated region
    $region62: #{tpu_custom_call.1} parent=1 // pred_check
      _
    $region63: #{tpu_custom_call.1} parent=1 // pred_check_branch
      %526 = sbr.rel (0) target = $region65
    $region64: #{tpu_custom_call.1} parent=1 // pred_region
      %527 = dma.done [#allocation4], 128
    $region65: #{tpu_custom_call.1} parent=1 // pred_fallthru
      _
    %528 = vsyncpa [#allocation3], 1
    %529 = vsyncpa [#allocation6], 1
    %530 = vsyncpa [#allocation9], 1
    %531 = vsyncpa [#allocation4], 1

</llo_original>
